<compile_context>
chip_gen: v7x
topology: tpu7x:2x2x1
jax: 0.10.0
libtpu: 0.0.40
codegen_flags: <defaults>
</compile_context>

<pallas_src>
import jax
import jax.numpy as jnp
from jax.experimental import pallas as pl
from jax.experimental.pallas import tpu as pltpu


LEAKY_SLOPE = 0.2


def _round_up(x, m):
    return ((x + m - 1) // m) * m


def generator_kernel(x_ref, w1_ref, b1_ref, w2_ref, b2_ref, w3_ref, b3_ref,
                     o_ref):
    # gen: Linear -> LeakyReLU -> Linear -> LeakyReLU   (bf16 MXU, f32 acc)
    h = jnp.dot(x_ref[...], w1_ref[...],
                preferred_element_type=jnp.float32) + b1_ref[...]
    h = jnp.maximum(h, LEAKY_SLOPE * h)
    h = jnp.dot(h.astype(w2_ref.dtype), w2_ref[...],
                preferred_element_type=jnp.float32) + b2_ref[...]
    h = jnp.maximum(h, LEAKY_SLOPE * h)
    # head: Linear -> Tanh
    h = jnp.dot(h.astype(w3_ref.dtype), w3_ref[...],
                preferred_element_type=jnp.float32) + b3_ref[...]
    # bf16 store: output writeback is the dominant HBM traffic.
    o_ref[...] = jnp.tanh(h).astype(o_ref.dtype)


def generator_forward(x, params, *, max_block_b=1024, out_dtype=jnp.bfloat16):
    """x: (B, input_size) float32 -> (B, img_size*img_size) `out_dtype`."""
    w1, b1, w2, b2, w3, b3 = params
    B, in_dim = x.shape
    h1 = w1.shape[1]
    h2 = w2.shape[1]
    out_dim = w3.shape[1]

    # --- lane-dense K: pad input_size to a multiple of 128 (zeros are exact) -
    in_pad = _round_up(in_dim, 128)
    if in_pad != in_dim:
        x = jnp.pad(x, ((0, 0), (0, in_pad - in_dim)))
        w1 = jnp.pad(w1, ((0, in_pad - in_dim), (0, 0)))

    # --- lane-dense head: pad output features to a multiple of 128 -----------
    n_out = _round_up(out_dim, 128)
    if n_out != out_dim:
        w3 = jnp.pad(w3, ((0, 0), (0, n_out - out_dim)))
        b3 = jnp.pad(b3, ((0, 0), (0, n_out - out_dim)))

    # --- balanced batch tiling ------------------------------------------------
    # Blocks are balanced so padding is at most 7 rows; once B >= 16 we force
    # at least 2 grid steps so v7x's second TensorCore has work to take.
    n_blocks = pl.cdiv(B, max_block_b)
    if B >= 16:
        n_blocks = max(n_blocks, 2)
    tb = _round_up(pl.cdiv(B, n_blocks), 8)
    b_pad = tb * n_blocks
    if b_pad != B:
        x = jnp.pad(x, ((0, b_pad - B), (0, 0)))

    # --- bf16 MXU inputs, f32 accumulation inside the kernel ------------------
    xb = x.astype(jnp.bfloat16)
    w1b = w1.astype(jnp.bfloat16)
    w2b = w2.astype(jnp.bfloat16)
    w3b = w3.astype(jnp.bfloat16)

    def resident(shape):
        # Constant index_map -> weight/bias stays VMEM-resident across steps.
        return pl.BlockSpec(shape, lambda i: (0, 0))

    weight_bytes = (xb.size * 2 + w1b.size * 2 + w2b.size * 2 + w3b.size * 2
                    + b1.size * 4 + b2.size * 4 + b3.size * 4)
    out_bytes = b_pad * n_out * jnp.dtype(out_dtype).itemsize
    cost = pl.CostEstimate(
        flops=2 * b_pad * (in_pad * h1 + h1 * h2 + h2 * n_out),
        transcendentals=b_pad * n_out,
        bytes_accessed=weight_bytes + out_bytes,
    )

    out = pl.pallas_call(
        generator_kernel,
        out_shape=jax.ShapeDtypeStruct((b_pad, n_out), out_dtype),
        grid=(n_blocks,),
        in_specs=[
            pl.BlockSpec((tb, in_pad), lambda i: (i, 0)),   # x: tiled over batch
            resident(w1b.shape), resident(b1.shape),
            resident(w2b.shape), resident(b2.shape),
            resident(w3b.shape), resident(b3.shape),
        ],
        out_specs=pl.BlockSpec((tb, n_out), lambda i: (i, 0)),
        compiler_params=pltpu.CompilerParams(
            dimension_semantics=("parallel",),   # v7x: 2 TCs split the batch grid
            vmem_limit_bytes=48 << 20,           # 1024-row tiles fit on v5e's scoped limit
        ),
        cost_estimate=cost,
    )(xb, w1b, b1, w2b, b2, w3b, b3)

    if b_pad == B and n_out == out_dim:
        return out
    return out[:B, :out_dim]


def init_linear(key, fan_in, fan_out):
    """Deterministic init mimicking PyTorch nn.Linear default (uniform +-1/sqrt(fan_in))."""
    kw, kb = jax.random.split(key)
    bound = 1.0 / jnp.sqrt(jnp.asarray(fan_in, jnp.float32))
    # stored as (in, out) so the kernel computes x @ W
    w = jax.random.uniform(kw, (fan_in, fan_out), jnp.float32, -bound, bound)
    b = jax.random.uniform(kb, (1, fan_out), jnp.float32, -bound, bound)
    return w, b


def reference_forward(x, params):
    w1, b1, w2, b2, w3, b3 = params
    h = x @ w1 + b1
    h = jnp.where(h > 0, h, LEAKY_SLOPE * h)
    h = h @ w2 + b2
    h = jnp.where(h > 0, h, LEAKY_SLOPE * h)
    return jnp.tanh(h @ w3 + b3)


if __name__ == "__main__":
    # Small shapes consistent with the module defaults: input_size=100
    # (padded to 128 inside the wrapper), img_size=28 (-> 784 output features,
    # padded to 896 inside the wrapper), hidden=128, batch=8.
    B, input_size, hidden, img_size = 8, 100, 128, 28

    key = jax.random.PRNGKey(0)
    kx, k1, k2, k3 = jax.random.split(key, 4)

    x = jax.random.normal(kx, (B, input_size), jnp.float32)

    w1, b1 = init_linear(k1, input_size, hidden)
    w2, b2 = init_linear(k2, hidden, hidden)
    w3, b3 = init_linear(k3, hidden, img_size * img_size)
    params = (w1, b1, w2, b2, w3, b3)

    out = generator_forward(x, params)
    out = jax.block_until_ready(out)

    ref = reference_forward(x, params)
    assert out.shape == (B, img_size * img_size)
    assert out.dtype == jnp.bfloat16
    # bf16 matmul inputs + bf16 output vs f32 reference: loosened tolerance
    # (tanh output is bounded, so absolute error stays small).
    err = jnp.max(jnp.abs(out.astype(jnp.float32) - ref))
    assert jnp.allclose(out.astype(jnp.float32), ref, atol=3e-2, rtol=3e-2), float(err)

    print("KERNEL_OK")
</pallas_src>

<mosaic_0001>
module attributes {stable_mosaic.version = 11 : i64} {
  func.func @generator_kernel(%arg0: i32, %arg1: memref<8x128xbf16, #tpu.memory_space<vmem>>, %arg2: memref<128x128xbf16, #tpu.memory_space<vmem>>, %arg3: memref<1x128xf32, #tpu.memory_space<vmem>>, %arg4: memref<128x128xbf16, #tpu.memory_space<vmem>>, %arg5: memref<1x128xf32, #tpu.memory_space<vmem>>, %arg6: memref<128x896xbf16, #tpu.memory_space<vmem>>, %arg7: memref<1x896xf32, #tpu.memory_space<vmem>>, %arg8: memref<8x896xbf16, #tpu.memory_space<vmem>>) attributes {dimension_semantics = [#tpu.dimension_semantics<parallel>], iteration_bounds = array<i64: 1>, scalar_prefetch = 0 : i64, scratch_operands = 0 : i64, tpu.core_type = #tpu.core_type<tc>, window_params = [{transform_indices = @transform_0, window_bounds = array<i64: 8, 128>}, {pipeline_mode = #tpu.pipeline_mode<synchronous>, transform_indices = @transform_1, window_bounds = array<i64: 128, 128>}, {pipeline_mode = #tpu.pipeline_mode<synchronous>, transform_indices = @transform_2, window_bounds = array<i64: 1, 128>}, {pipeline_mode = #tpu.pipeline_mode<synchronous>, transform_indices = @transform_3, window_bounds = array<i64: 128, 128>}, {pipeline_mode = #tpu.pipeline_mode<synchronous>, transform_indices = @transform_4, window_bounds = array<i64: 1, 128>}, {pipeline_mode = #tpu.pipeline_mode<synchronous>, transform_indices = @transform_5, window_bounds = array<i64: 128, 896>}, {pipeline_mode = #tpu.pipeline_mode<synchronous>, transform_indices = @transform_6, window_bounds = array<i64: 1, 896>}, {transform_indices = @transform_7, window_bounds = array<i64: 8, 896>}]} {
    %c0 = arith.constant 0 : index
    %c0_0 = arith.constant 0 : index
    %0 = vector.load %arg1[%c0, %c0_0] : memref<8x128xbf16, #tpu.memory_space<vmem>>, vector<8x128xbf16>
    %c0_1 = arith.constant 0 : index
    %c0_2 = arith.constant 0 : index
    %1 = vector.load %arg2[%c0_1, %c0_2] : memref<128x128xbf16, #tpu.memory_space<vmem>>, vector<128x128xbf16>
    %cst = arith.constant dense<0.000000e+00> : vector<8x128xf32>
    %2 = tpu.matmul %0, %1, %cst {dimension_numbers = #tpu.dot_dimension_numbers<[1], [0], [0], [1], [0, 0, 1, 1], [], []>} : vector<8x128xbf16>, vector<128x128xbf16>, vector<8x128xf32> -> vector<8x128xf32>
    %c0_3 = arith.constant 0 : index
    %c0_4 = arith.constant 0 : index
    %3 = vector.load %arg3[%c0_3, %c0_4] : memref<1x128xf32, #tpu.memory_space<vmem>>, vector<1x128xf32>
    %4 = vector.broadcast %3 : vector<1x128xf32> to vector<8x128xf32>
    %5 = arith.addf %2, %4 : vector<8x128xf32>
    %cst_5 = arith.constant 2.000000e-01 : f32
    %6 = vector.broadcast %cst_5 : f32 to vector<8x128xf32>
    %7 = arith.mulf %6, %5 : vector<8x128xf32>
    %8 = arith.maximumf %5, %7 : vector<8x128xf32>
    %9 = arith.truncf %8 : vector<8x128xf32> to vector<8x128xbf16>
    %c0_6 = arith.constant 0 : index
    %c0_7 = arith.constant 0 : index
    %10 = vector.load %arg4[%c0_6, %c0_7] : memref<128x128xbf16, #tpu.memory_space<vmem>>, vector<128x128xbf16>
    %cst_8 = arith.constant dense<0.000000e+00> : vector<8x128xf32>
    %11 = tpu.matmul %9, %10, %cst_8 {dimension_numbers = #tpu.dot_dimension_numbers<[1], [0], [0], [1], [0, 0, 1, 1], [], []>} : vector<8x128xbf16>, vector<128x128xbf16>, vector<8x128xf32> -> vector<8x128xf32>
    %c0_9 = arith.constant 0 : index
    %c0_10 = arith.constant 0 : index
    %12 = vector.load %arg5[%c0_9, %c0_10] : memref<1x128xf32, #tpu.memory_space<vmem>>, vector<1x128xf32>
    %13 = vector.broadcast %12 : vector<1x128xf32> to vector<8x128xf32>
    %14 = arith.addf %11, %13 : vector<8x128xf32>
    %cst_11 = arith.constant 2.000000e-01 : f32
    %15 = vector.broadcast %cst_11 : f32 to vector<8x128xf32>
    %16 = arith.mulf %15, %14 : vector<8x128xf32>
    %17 = arith.maximumf %14, %16 : vector<8x128xf32>
    %18 = arith.truncf %17 : vector<8x128xf32> to vector<8x128xbf16>
    %c0_12 = arith.constant 0 : index
    %c0_13 = arith.constant 0 : index
    %19 = vector.load %arg6[%c0_12, %c0_13] : memref<128x896xbf16, #tpu.memory_space<vmem>>, vector<128x896xbf16>
    %cst_14 = arith.constant dense<0.000000e+00> : vector<8x896xf32>
    %20 = tpu.matmul %18, %19, %cst_14 {dimension_numbers = #tpu.dot_dimension_numbers<[1], [0], [0], [1], [0, 0, 1, 1], [], []>} : vector<8x128xbf16>, vector<128x896xbf16>, vector<8x896xf32> -> vector<8x896xf32>
    %c0_15 = arith.constant 0 : index
    %c0_16 = arith.constant 0 : index
    %21 = vector.load %arg7[%c0_15, %c0_16] : memref<1x896xf32, #tpu.memory_space<vmem>>, vector<1x896xf32>
    %22 = vector.broadcast %21 : vector<1x896xf32> to vector<8x896xf32>
    %23 = arith.addf %20, %22 : vector<8x896xf32>
    %24 = math.tanh %23 : vector<8x896xf32>
    %25 = arith.truncf %24 : vector<8x896xf32> to vector<8x896xbf16>
    %c0_17 = arith.constant 0 : index
    %c0_18 = arith.constant 0 : index
    %26 = vector.load %arg8[%c0_17, %c0_18] : memref<8x896xbf16, #tpu.memory_space<vmem>>, vector<8x896xbf16>
    tpu.vector_store %arg8[%c0_17, %c0_18], %25 {strides = array<i32>} : memref<8x896xbf16, #tpu.memory_space<vmem>>, vector<8x896xbf16>,
    return
  }
  func.func @transform_0(%arg0: i32) -> (i32, i32) {
    %c0_i32 = arith.constant 0 : i32
    %c0_i32_0 = arith.constant 0 : i32
    return %arg0, %c0_i32 : i32, i32
  }
  func.func @transform_1(%arg0: i32) -> (i32, i32) {
    %c0_i32 = arith.constant 0 : i32
    %c0_i32_0 = arith.constant 0 : i32
    %c0_i32_1 = arith.constant 0 : i32
    return %c0_i32, %c0_i32_0 : i32, i32
  }
  func.func @transform_2(%arg0: i32) -> (i32, i32) {
    %c0_i32 = arith.constant 0 : i32
    %c0_i32_0 = arith.constant 0 : i32
    %c0_i32_1 = arith.constant 0 : i32
    return %c0_i32, %c0_i32_0 : i32, i32
  }
  func.func @transform_3(%arg0: i32) -> (i32, i32) {
    %c0_i32 = arith.constant 0 : i32
    %c0_i32_0 = arith.constant 0 : i32
    %c0_i32_1 = arith.constant 0 : i32
    return %c0_i32, %c0_i32_0 : i32, i32
  }
  func.func @transform_4(%arg0: i32) -> (i32, i32) {
    %c0_i32 = arith.constant 0 : i32
    %c0_i32_0 = arith.constant 0 : i32
    %c0_i32_1 = arith.constant 0 : i32
    return %c0_i32, %c0_i32_0 : i32, i32
  }
  func.func @transform_5(%arg0: i32) -> (i32, i32) {
    %c0_i32 = arith.constant 0 : i32
    %c0_i32_0 = arith.constant 0 : i32
    %c0_i32_1 = arith.constant 0 : i32
    return %c0_i32, %c0_i32_0 : i32, i32
  }
  func.func @transform_6(%arg0: i32) -> (i32, i32) {
    %c0_i32 = arith.constant 0 : i32
    %c0_i32_0 = arith.constant 0 : i32
    %c0_i32_1 = arith.constant 0 : i32
    return %c0_i32, %c0_i32_0 : i32, i32
  }
  func.func @transform_7(%arg0: i32) -> (i32, i32) {
    %c0_i32 = arith.constant 0 : i32
    %c0_i32_0 = arith.constant 0 : i32
    return %arg0, %c0_i32 : i32, i32
  }
}

</mosaic_0001>

<llo_original>
// kernel: tpu_custom_call.1
$region0: #{tpu_custom_call.1}
  #allocation0 [shape = 'u32[]', space=smem, size = 0x4, offset = 0x4, fixed_abs, tag = 'smem constant byte address 0x4 - core index']
  #allocation1 [shape = 'u32[144,128]{1,0:T(1,128)}', space=vmem, size = 0x12000, scoped, tag = 'internal scratch']
  %s0 = inlined_call_operand.hbm [shape: bf16[8,128], index: 0, kind: input, shape index: {}]
  %s1 = inlined_call_operand.hbm [shape: bf16[128,128], index: 1, kind: input, shape index: {}]
  %s2 = inlined_call_operand.vmem [shape: f32[1,128], index: 2, kind: input, shape index: {}]
  %s3 = inlined_call_operand.hbm [shape: bf16[128,128], index: 3, kind: input, shape index: {}]
  %s4 = inlined_call_operand.vmem [shape: f32[1,128], index: 4, kind: input, shape index: {}]
  %s5 = inlined_call_operand.hbm [shape: bf16[128,896], index: 5, kind: input, shape index: {}]
  %s6 = inlined_call_operand.vmem [shape: f32[1,896], index: 6, kind: input, shape index: {}]
  %s7 = inlined_call_operand.hbm [shape: bf16[8,896], index: 7, kind: output, shape index: {}]
  %s8 = sld [smem:[#allocation0]]
  $region54: #{tpu_custom_call.1} parent=0
    _
  %s10 = ssub.s32 1, %s8
  %s11 = scalar_select 0, %s10, %s8
  $region1: #{tpu_custom_call.1} parent=0
    #allocation2 [shape = 'u8[2048]{0}', space=vmem, size = 0x800, scoped, tag = 'input window, operand 0, single buffered']
    #allocation3 [shape = 's32[1]{0}', space=sflag, size = 0x4, scoped, tag = 'scoped memory for tpu_custom_call.1']
    #allocation4 [shape = 's32[1]{0}', space=sflag, size = 0x4, scoped, tag = 'scoped memory for tpu_custom_call.1']
    #allocation5 [shape = 'u8[32768]{0}', space=vmem, size = 0x8000, scoped, tag = 'input window, operand 1, single buffered']
    #allocation6 [shape = 's32[1]{0}', space=sflag, size = 0x4, scoped, tag = 'scoped memory for tpu_custom_call.1']
    #allocation7 [shape = 'u8[32768]{0}', space=vmem, size = 0x8000, scoped, tag = 'input window, operand 3, single buffered']
    #allocation8 [shape = 'u8[229376]{0}', space=vmem, size = 0x38000, scoped, tag = 'input window, operand 5, single buffered']
    #allocation9 [shape = 's32[1]{0}', space=sflag, size = 0x4, scoped, tag = 'scoped memory for tpu_custom_call.1']
    #allocation10 [shape = 'u8[14336]{0}', space=vmem, size = 0x3800, scoped, tag = 'output window, operand 0, single buffered']
    %12 = vsyncpa [#allocation3], 0
    %13 = vsyncpa [#allocation6], 0
    %14 = vsyncpa [#allocation9], 0
    %15 = vsyncpa [#allocation4], 0
    // Predicated region
    $region2: #{tpu_custom_call.1} parent=1 // pred_check
      _
    $region3: #{tpu_custom_call.1} parent=1 // pred_check_branch
      %17 = sbr.rel (0) target = $region5
    $region4: #{tpu_custom_call.1} parent=1 // pred_region
      %s19 = ssub.s32 64, 64
      %20 = vsyncadd [#allocation3], %s19
      %s22 = sshll.u32 [#allocation2], 4
      %s23 = int_to_ptr.vmem [resolvable:$true] %s22
      %25 = dma.hbm_to_vmem [thread:$0]  %s0, 64, %s23, [#allocation3]
    $region5: #{tpu_custom_call.1} parent=1 // pred_fallthru
      _
    // Predicated region
    $region6: #{tpu_custom_call.1} parent=1 // pred_check
      _
    $region7: #{tpu_custom_call.1} parent=1 // pred_check_branch
      %27 = sbr.rel (0) target = $region9
    $region8: #{tpu_custom_call.1} parent=1 // pred_region
      %s29 = ssub.s32 1024, 1024
      %30 = vsyncadd [#allocation6], %s29
      %s31 = sshll.u32 [#allocation5], 4
      %s32 = int_to_ptr.vmem [resolvable:$true] %s31
      %37 = dma.hbm_to_vmem [thread:$0]  %s1, 1024, %s32, [#allocation6], 64, 64, 4
    $region9: #{tpu_custom_call.1} parent=1 // pred_fallthru
      _
    // Predicated region
    $region10: #{tpu_custom_call.1} parent=1 // pred_check
      _
    $region11: #{tpu_custom_call.1} parent=1 // pred_check_branch
      %39 = sbr.rel (0) target = $region13
    $region12: #{tpu_custom_call.1} parent=1 // pred_region
      _
    $region13: #{tpu_custom_call.1} parent=1 // pred_fallthru
      _
    // Predicated region
    $region14: #{tpu_custom_call.1} parent=1 // pred_check
      _
    $region15: #{tpu_custom_call.1} parent=1 // pred_check_branch
      %41 = sbr.rel (0) target = $region17
    $region16: #{tpu_custom_call.1} parent=1 // pred_region
      %s43 = ssub.s32 1024, 1024
      %44 = vsyncadd [#allocation6], %s43
      %s45 = sshll.u32 [#allocation7], 4
      %s46 = int_to_ptr.vmem [resolvable:$true] %s45
      %51 = dma.hbm_to_vmem [thread:$0]  %s3, 1024, %s46, [#allocation6], 64, 64, 4
    $region17: #{tpu_custom_call.1} parent=1 // pred_fallthru
      _
    // Predicated region
    $region18: #{tpu_custom_call.1} parent=1 // pred_check
      _
    $region19: #{tpu_custom_call.1} parent=1 // pred_check_branch
      %53 = sbr.rel (0) target = $region21
    $region20: #{tpu_custom_call.1} parent=1 // pred_region
      _
    $region21: #{tpu_custom_call.1} parent=1 // pred_fallthru
      _
    // Predicated region
    $region22: #{tpu_custom_call.1} parent=1 // pred_check
      _
    $region23: #{tpu_custom_call.1} parent=1 // pred_check_branch
      %55 = sbr.rel (0) target = $region25
    $region24: #{tpu_custom_call.1} parent=1 // pred_region
      %s57 = ssub.s32 7168, 7168
      %58 = vsyncadd [#allocation9], %s57
      %s59 = sshll.u32 [#allocation8], 4
      %s60 = int_to_ptr.vmem [resolvable:$true] %s59
      %65 = dma.hbm_to_vmem [thread:$0]  %s5, 7168, %s60, [#allocation9], 448, 448, 28
    $region25: #{tpu_custom_call.1} parent=1 // pred_fallthru
      _
    // Predicated region
    $region26: #{tpu_custom_call.1} parent=1 // pred_check
      _
    $region27: #{tpu_custom_call.1} parent=1 // pred_check_branch
      %67 = sbr.rel (0) target = $region29
    $region28: #{tpu_custom_call.1} parent=1 // pred_region
      _
    $region29: #{tpu_custom_call.1} parent=1 // pred_fallthru
      _
    // Predicated region
    $region30: #{tpu_custom_call.1} parent=1 // pred_check
      _
    $region31: #{tpu_custom_call.1} parent=1 // pred_check_branch
      %69 = sbr.rel (0) target = $region33
    $region32: #{tpu_custom_call.1} parent=1 // pred_region
      %70 = dma.done [#allocation3], 64
    $region33: #{tpu_custom_call.1} parent=1 // pred_fallthru
      _
    // Predicated region
    $region34: #{tpu_custom_call.1} parent=1 // pred_check
      _
    $region35: #{tpu_custom_call.1} parent=1 // pred_check_branch
      %72 = sbr.rel (0) target = $region37
    $region36: #{tpu_custom_call.1} parent=1 // pred_region
      %73 = dma.done [#allocation6], 1024
    $region37: #{tpu_custom_call.1} parent=1 // pred_fallthru
      _
    // Predicated region
    $region38: #{tpu_custom_call.1} parent=1 // pred_check
      _
    $region39: #{tpu_custom_call.1} parent=1 // pred_check_branch
      %75 = sbr.rel (0) target = $region41
    $region40: #{tpu_custom_call.1} parent=1 // pred_region
      %76 = dma.done [#allocation6], 1024
    $region41: #{tpu_custom_call.1} parent=1 // pred_fallthru
      _
    // Predicated region
    $region42: #{tpu_custom_call.1} parent=1 // pred_check
      _
    $region43: #{tpu_custom_call.1} parent=1 // pred_check_branch
      %78 = sbr.rel (0) target = $region45
    $region44: #{tpu_custom_call.1} parent=1 // pred_region
      %79 = dma.done [#allocation9], 7168
    $region45: #{tpu_custom_call.1} parent=1 // pred_fallthru
      _
    %v81 = vld [vmem:[#allocation2] sm:$0xf]
    %v82 = vld [vmem:[#allocation5] sm:$0xf]
    %v83 = vld [vmem:[#allocation5 + $0x4] sm:$0xf]
    %v84 = vld [vmem:[#allocation5 + $0x8] sm:$0xf]
    %v85 = vld [vmem:[#allocation5 + $0xc] sm:$0xf]
    %v86 = vld [vmem:[#allocation5 + $0x10] sm:$0xf]
    %v87 = vld [vmem:[#allocation5 + $0x14] sm:$0xf]
    %v88 = vld [vmem:[#allocation5 + $0x18] sm:$0xf]
    %v89 = vld [vmem:[#allocation5 + $0x1c] sm:$0xf]
    %v90 = vld [vmem:[#allocation5 + $0x20] sm:$0xf]
    %v91 = vld [vmem:[#allocation5 + $0x24] sm:$0xf]
    %v92 = vld [vmem:[#allocation5 + $0x28] sm:$0xf]
    %v93 = vld [vmem:[#allocation5 + $0x2c] sm:$0xf]
    %v94 = vld [vmem:[#allocation5 + $0x30] sm:$0xf]
    %v95 = vld [vmem:[#allocation5 + $0x34] sm:$0xf]
    %v96 = vld [vmem:[#allocation5 + $0x38] sm:$0xf]
    %v97 = vld [vmem:[#allocation5 + $0x3c] sm:$0xf]
    %v98 = vld [vmem:[%s2] sm:$0x1]
    %v100 = vlaneseq
    %v101 = vshrl.u32 %v100, 7
    %v102 = vsub.s32 0, %v101
    %v103 = vrot.slane %v98, %v102
    %v121 = vunpack.c.l.b16 %v82
    %v122 = vunpack.c.l.b16 %v83
    %v123 = vunpack.c.l.b16 %v84
    %v124 = vunpack.c.l.b16 %v85
    %v125 = vunpack.c.l.b16 %v86
    %v126 = vunpack.c.l.b16 %v87
    %v127 = vunpack.c.l.b16 %v88
    %v128 = vunpack.c.l.b16 %v89
    %v129 = vunpack.c.l.b16 %v90
    %v130 = vunpack.c.l.b16 %v91
    %v131 = vunpack.c.l.b16 %v92
    %v132 = vunpack.c.l.b16 %v93
    %v133 = vunpack.c.l.b16 %v94
    %v134 = vunpack.c.l.b16 %v95
    %v135 = vunpack.c.l.b16 %v96
    %v136 = vunpack.c.l.b16 %v97
    %v137 = vpack.c.b16 %v122, %v121
    %v138 = vpack.c.b16 %v124, %v123
    %v139 = vpack.c.b16 %v126, %v125
    %v140 = vpack.c.b16 %v128, %v127
    %v141 = vpack.c.b16 %v130, %v129
    %v142 = vpack.c.b16 %v132, %v131
    %v143 = vpack.c.b16 %v134, %v133
    %v144 = vpack.c.b16 %v136, %v135
    %153 = vmatprep.subr.bf16.mxu0 0
    %154 = vmatpush1.bf16.msra.mxu0 %v137
    %155 = vmatprep.subr.bf16.mxu0 0
    %156 = vmatpush1.bf16.msra.mxu0 %v138
    %157 = vmatprep.subr.bf16.mxu0 0
    %158 = vmatpush1.bf16.msra.mxu0 %v139
    %159 = vmatprep.subr.bf16.mxu0 0
    %160 = vmatpush1.bf16.msra.mxu0 %v140
    %161 = vmatprep.subr.bf16.mxu0 0
    %162 = vmatpush1.bf16.msra.mxu0 %v141
    %163 = vmatprep.subr.bf16.mxu0 0
    %164 = vmatpush1.bf16.msra.mxu0 %v142
    %165 = vmatprep.subr.bf16.mxu0 0
    %166 = vmatpush1.bf16.msra.mxu0 %v143
    %167 = vmatprep.subr.bf16.mxu0 0
    %168 = vmatpush1.bf16.msra.mxu0 %v144
    %169 = vmatprep.subr.bf16.mxu0 0
    %170 = vmatpush1.bf16.msra.mxu0 0
    %171 = vmatprep.subr.bf16.mxu0 0
    %172 = vmatpush1.bf16.msra.mxu0 0
    %173 = vmatprep.subr.bf16.mxu0 0
    %174 = vmatpush1.bf16.msra.mxu0 0
    %175 = vmatprep.subr.bf16.mxu0 0
    %176 = vmatpush1.bf16.msra.mxu0 0
    %177 = vmatprep.subr.bf16.mxu0 0
    %178 = vmatpush1.bf16.msra.mxu0 0
    %179 = vmatprep.subr.bf16.mxu0 0
    %180 = vmatpush1.bf16.msra.mxu0 0
    %181 = vmatprep.subr.bf16.mxu0 0
    %182 = vmatpush1.bf16.msra.mxu0 0
    %183 = vmatprep.subr.bf16.mxu0 0
    %184 = vmatpush1.bf16.msra.mxu0 0
    %185 = vmatprep.mubr.bf16.mxu0 0
    %186 = vmatmul.mubr.bf16.gmra.mrb[0].mxu0 %v81
    %v187 = vpop.f32.mrb[0].mxu0
    %v188 = vadd.f32 %v103, %v187
    %v189 = vpop.f32.mrb[0].mxu0
    %v190 = vpop.f32.mrb[0].mxu0
    %v191 = vpop.f32.mrb[0].mxu0
    %192 = vdwg.mxu0
    %v193 = vmul.f32 %v188, 0.2
    %v194 = vmax.f32 %v188, %v193
    %v195 = vpack.c.bf16 %v194, %v194
    %v196 = vld [vmem:[#allocation7] sm:$0xf]
    %v197 = vld [vmem:[#allocation7 + $0x4] sm:$0xf]
    %v198 = vld [vmem:[#allocation7 + $0x8] sm:$0xf]
    %v199 = vld [vmem:[#allocation7 + $0xc] sm:$0xf]
    %v200 = vld [vmem:[#allocation7 + $0x10] sm:$0xf]
    %v201 = vld [vmem:[#allocation7 + $0x14] sm:$0xf]
    %v202 = vld [vmem:[#allocation7 + $0x18] sm:$0xf]
    %v203 = vld [vmem:[#allocation7 + $0x1c] sm:$0xf]
    %v204 = vld [vmem:[#allocation7 + $0x20] sm:$0xf]
    %v205 = vld [vmem:[#allocation7 + $0x24] sm:$0xf]
    %v206 = vld [vmem:[#allocation7 + $0x28] sm:$0xf]
    %v207 = vld [vmem:[#allocation7 + $0x2c] sm:$0xf]
    %v208 = vld [vmem:[#allocation7 + $0x30] sm:$0xf]
    %v209 = vld [vmem:[#allocation7 + $0x34] sm:$0xf]
    %v210 = vld [vmem:[#allocation7 + $0x38] sm:$0xf]
    %v211 = vld [vmem:[#allocation7 + $0x3c] sm:$0xf]
    %v212 = vld [vmem:[%s4] sm:$0x1]
    %v214 = vlaneseq
    %v215 = vshrl.u32 %v214, 7
    %v216 = vsub.s32 0, %v215
    %v217 = vrot.slane %v212, %v216
    %v235 = vunpack.c.l.b16 %v196
    %v236 = vunpack.c.l.b16 %v197
    %v237 = vunpack.c.l.b16 %v198
    %v238 = vunpack.c.l.b16 %v199
    %v239 = vunpack.c.l.b16 %v200
    %v240 = vunpack.c.l.b16 %v201
    %v241 = vunpack.c.l.b16 %v202
    %v242 = vunpack.c.l.b16 %v203
    %v243 = vunpack.c.l.b16 %v204
    %v244 = vunpack.c.l.b16 %v205
    %v245 = vunpack.c.l.b16 %v206
    %v246 = vunpack.c.l.b16 %v207
    %v247 = vunpack.c.l.b16 %v208
    %v248 = vunpack.c.l.b16 %v209
    %v249 = vunpack.c.l.b16 %v210
    %v250 = vunpack.c.l.b16 %v211
    %v251 = vpack.c.b16 %v236, %v235
    %v252 = vpack.c.b16 %v238, %v237
    %v253 = vpack.c.b16 %v240, %v239
    %v254 = vpack.c.b16 %v242, %v241
    %v255 = vpack.c.b16 %v244, %v243
    %v256 = vpack.c.b16 %v246, %v245
    %v257 = vpack.c.b16 %v248, %v247
    %v258 = vpack.c.b16 %v250, %v249
    %267 = vmatprep.subr.bf16.mxu0 0
    %268 = vmatpush1.bf16.msra.mxu0 %v251
    %269 = vmatprep.subr.bf16.mxu0 0
    %270 = vmatpush1.bf16.msra.mxu0 %v252
    %271 = vmatprep.subr.bf16.mxu0 0
    %272 = vmatpush1.bf16.msra.mxu0 %v253
    %273 = vmatprep.subr.bf16.mxu0 0
    %274 = vmatpush1.bf16.msra.mxu0 %v254
    %275 = vmatprep.subr.bf16.mxu0 0
    %276 = vmatpush1.bf16.msra.mxu0 %v255
    %277 = vmatprep.subr.bf16.mxu0 0
    %278 = vmatpush1.bf16.msra.mxu0 %v256
    %279 = vmatprep.subr.bf16.mxu0 0
    %280 = vmatpush1.bf16.msra.mxu0 %v257
    %281 = vmatprep.subr.bf16.mxu0 0
    %282 = vmatpush1.bf16.msra.mxu0 %v258
    %283 = vmatprep.subr.bf16.mxu0 0
    %284 = vmatpush1.bf16.msra.mxu0 0
    %285 = vmatprep.subr.bf16.mxu0 0
    %286 = vmatpush1.bf16.msra.mxu0 0
    %287 = vmatprep.subr.bf16.mxu0 0
    %288 = vmatpush1.bf16.msra.mxu0 0
    %289 = vmatprep.subr.bf16.mxu0 0
    %290 = vmatpush1.bf16.msra.mxu0 0
    %291 = vmatprep.subr.bf16.mxu0 0
    %292 = vmatpush1.bf16.msra.mxu0 0
    %293 = vmatprep.subr.bf16.mxu0 0
    %294 = vmatpush1.bf16.msra.mxu0 0
    %295 = vmatprep.subr.bf16.mxu0 0
    %296 = vmatpush1.bf16.msra.mxu0 0
    %297 = vmatprep.subr.bf16.mxu0 0
    %298 = vmatpush1.bf16.msra.mxu0 0
    %299 = vmatprep.mubr.bf16.mxu0 0
    %300 = vmatmul.mubr.bf16.gmra.mrb[0].mxu0 %v195
    %v301 = vpop.f32.mrb[0].mxu0
    %v302 = vadd.f32 %v217, %v301
    %v303 = vpop.f32.mrb[0].mxu0
    %v304 = vpop.f32.mrb[0].mxu0
    %v305 = vpop.f32.mrb[0].mxu0
    %306 = vdwg.mxu0
    %v307 = vmul.f32 %v302, 0.2
    %v308 = vmax.f32 %v302, %v307
    %v309 = vpack.c.bf16 %v308, %v308
    %v310 = vld [vmem:[#allocation8] sm:$0xff]
    %v311 = vld [vmem:[#allocation8 + $0x8] sm:$0xff]
    %v312 = vld [vmem:[#allocation8 + $0x10] sm:$0xff]
    %v313 = vld [vmem:[#allocation8 + $0x18] sm:$0xf]
    %v314 = vld [vmem:[#allocation8 + $0x1c] sm:$0xff]
    %v315 = vld [vmem:[#allocation8 + $0x24] sm:$0xff]
    %v316 = vld [vmem:[#allocation8 + $0x2c] sm:$0xff]
    %v317 = vld [vmem:[#allocation8 + $0x34] sm:$0xf]
    %v318 = vld [vmem:[#allocation8 + $0x38] sm:$0xff]
    %v319 = vld [vmem:[#allocation8 + $0x40] sm:$0xff]
    %v320 = vld [vmem:[#allocation8 + $0x48] sm:$0xff]
    %v321 = vld [vmem:[#allocation8 + $0x50] sm:$0xf]
    %v322 = vld [vmem:[#allocation8 + $0x54] sm:$0xff]
    %v323 = vld [vmem:[#allocation8 + $0x5c] sm:$0xff]
    %v324 = vld [vmem:[#allocation8 + $0x64] sm:$0xff]
    %v325 = vld [vmem:[#allocation8 + $0x6c] sm:$0xf]
    %v326 = vld [vmem:[#allocation8 + $0x70] sm:$0xff]
    %v327 = vld [vmem:[#allocation8 + $0x78] sm:$0xff]
    %v328 = vld [vmem:[#allocation8 + $0x80] sm:$0xff]
    %v329 = vld [vmem:[#allocation8 + $0x88] sm:$0xf]
    %v330 = vld [vmem:[#allocation8 + $0x8c] sm:$0xff]
    %v331 = vld [vmem:[#allocation8 + $0x94] sm:$0xff]
    %v332 = vld [vmem:[#allocation8 + $0x9c] sm:$0xff]
    %v333 = vld [vmem:[#allocation8 + $0xa4] sm:$0xf]
    %v334 = vld [vmem:[#allocation8 + $0xa8] sm:$0xff]
    %v335 = vld [vmem:[#allocation8 + $0xb0] sm:$0xff]
    %v336 = vld [vmem:[#allocation8 + $0xb8] sm:$0xff]
    %v337 = vld [vmem:[#allocation8 + $0xc0] sm:$0xf]
    %v338 = vld [vmem:[#allocation8 + $0xc4] sm:$0xff]
    %v339 = vld [vmem:[#allocation8 + $0xcc] sm:$0xff]
    %v340 = vld [vmem:[#allocation8 + $0xd4] sm:$0xff]
    %v341 = vld [vmem:[#allocation8 + $0xdc] sm:$0xf]
    %v342 = vld [vmem:[#allocation8 + $0xe0] sm:$0xff]
    %v343 = vld [vmem:[#allocation8 + $0xe8] sm:$0xff]
    %v344 = vld [vmem:[#allocation8 + $0xf0] sm:$0xff]
    %v345 = vld [vmem:[#allocation8 + $0xf8] sm:$0xf]
    %v346 = vld [vmem:[#allocation8 + $0xfc] sm:$0xff]
    %v347 = vld [vmem:[#allocation8 + $0x104] sm:$0xff]
    %v348 = vld [vmem:[#allocation8 + $0x10c] sm:$0xff]
    %v349 = vld [vmem:[#allocation8 + $0x114] sm:$0xf]
    %v350 = vld [vmem:[#allocation8 + $0x118] sm:$0xff]
    %v351 = vld [vmem:[#allocation8 + $0x120] sm:$0xff]
    %v352 = vld [vmem:[#allocation8 + $0x128] sm:$0xff]
    %v353 = vld [vmem:[#allocation8 + $0x130] sm:$0xf]
    %v354 = vld [vmem:[#allocation8 + $0x134] sm:$0xff]
    %v355 = vld [vmem:[#allocation8 + $0x13c] sm:$0xff]
    %v356 = vld [vmem:[#allocation8 + $0x144] sm:$0xff]
    %v357 = vld [vmem:[#allocation8 + $0x14c] sm:$0xf]
    %v358 = vld [vmem:[#allocation8 + $0x150] sm:$0xff]
    %v359 = vld [vmem:[#allocation8 + $0x158] sm:$0xff]
    %v360 = vld [vmem:[#allocation8 + $0x160] sm:$0xff]
    %v361 = vld [vmem:[#allocation8 + $0x168] sm:$0xf]
    %v362 = vld [vmem:[#allocation8 + $0x16c] sm:$0xff]
    %v363 = vld [vmem:[#allocation8 + $0x174] sm:$0xff]
    %v364 = vld [vmem:[#allocation8 + $0x17c] sm:$0xff]
    %v365 = vld [vmem:[#allocation8 + $0x184] sm:$0xf]
    %v366 = vld [vmem:[#allocation8 + $0x188] sm:$0xff]
    %v367 = vld [vmem:[#allocation8 + $0x190] sm:$0xff]
    %v368 = vld [vmem:[#allocation8 + $0x198] sm:$0xff]
    %v369 = vld [vmem:[#allocation8 + $0x1a0] sm:$0xf]
    %v370 = vld [vmem:[#allocation8 + $0x1a4] sm:$0xff]
    %v371 = vld [vmem:[#allocation8 + $0x1ac] sm:$0xff]
    %v372 = vld [vmem:[#allocation8 + $0x1b4] sm:$0xff]
    %v373 = vld [vmem:[#allocation8 + $0x1bc] sm:$0xf]
    %v374 = vld [vmem:[%s6] sm:$0xff]
    %v376 = vlaneseq
    %v377 = vshrl.u32 %v376, 7
    %v378 = vsub.s32 0, %v377
    %v379 = vrot.slane %v374, %v378
    %v380 = vlaneseq
    %v381 = vshrl.u32 %v380, 7
    %v382 = vsub.s32 1, %v381
    %v383 = vrot.slane %v374, %v382
    %v384 = vlaneseq
    %v385 = vshrl.u32 %v384, 7
    %v386 = vsub.s32 2, %v385
    %v387 = vrot.slane %v374, %v386
    %v388 = vlaneseq
    %v389 = vshrl.u32 %v388, 7
    %v390 = vsub.s32 3, %v389
    %v391 = vrot.slane %v374, %v390
    %v392 = vlaneseq
    %v393 = vshrl.u32 %v392, 7
    %v394 = vsub.s32 4, %v393
    %v395 = vrot.slane %v374, %v394
    %v396 = vlaneseq
    %v397 = vshrl.u32 %v396, 7
    %v398 = vsub.s32 5, %v397
    %v399 = vrot.slane %v374, %v398
    %v400 = vlaneseq
    %v401 = vshrl.u32 %v400, 7
    %v402 = vsub.s32 6, %v401
    %v403 = vrot.slane %v374, %v402
    %v475 = vunpack.c.l.b16 %v310
    %v476 = vunpack.c.h.b16 %v310
    %v477 = vunpack.c.l.b16 %v311
    %v478 = vunpack.c.h.b16 %v311
    %v479 = vunpack.c.l.b16 %v312
    %v480 = vunpack.c.h.b16 %v312
    %v481 = vunpack.c.l.b16 %v313
    %v482 = vunpack.c.l.b16 %v314
    %v483 = vunpack.c.h.b16 %v314
    %v484 = vunpack.c.l.b16 %v315
    %v485 = vunpack.c.h.b16 %v315
    %v486 = vunpack.c.l.b16 %v316
    %v487 = vunpack.c.h.b16 %v316
    %v488 = vunpack.c.l.b16 %v317
    %v489 = vunpack.c.l.b16 %v318
    %v490 = vunpack.c.h.b16 %v318
    %v491 = vunpack.c.l.b16 %v319
    %v492 = vunpack.c.h.b16 %v319
    %v493 = vunpack.c.l.b16 %v320
    %v494 = vunpack.c.h.b16 %v320
    %v495 = vunpack.c.l.b16 %v321
    %v496 = vunpack.c.l.b16 %v322
    %v497 = vunpack.c.h.b16 %v322
    %v498 = vunpack.c.l.b16 %v323
    %v499 = vunpack.c.h.b16 %v323
    %v500 = vunpack.c.l.b16 %v324
    %v501 = vunpack.c.h.b16 %v324
    %v502 = vunpack.c.l.b16 %v325
    %v503 = vunpack.c.l.b16 %v326
    %v504 = vunpack.c.h.b16 %v326
    %v505 = vunpack.c.l.b16 %v327
    %v506 = vunpack.c.h.b16 %v327
    %v507 = vunpack.c.l.b16 %v328
    %v508 = vunpack.c.h.b16 %v328
    %v509 = vunpack.c.l.b16 %v329
    %v510 = vunpack.c.l.b16 %v330
    %v511 = vunpack.c.h.b16 %v330
    %v512 = vunpack.c.l.b16 %v331
    %v513 = vunpack.c.h.b16 %v331
    %v514 = vunpack.c.l.b16 %v332
    %v515 = vunpack.c.h.b16 %v332
    %v516 = vunpack.c.l.b16 %v333
    %v517 = vunpack.c.l.b16 %v334
    %v518 = vunpack.c.h.b16 %v334
    %v519 = vunpack.c.l.b16 %v335
    %v520 = vunpack.c.h.b16 %v335
    %v521 = vunpack.c.l.b16 %v336
    %v522 = vunpack.c.h.b16 %v336
    %v523 = vunpack.c.l.b16 %v337
    %v524 = vunpack.c.l.b16 %v338
    %v525 = vunpack.c.h.b16 %v338
    %v526 = vunpack.c.l.b16 %v339
    %v527 = vunpack.c.h.b16 %v339
    %v528 = vunpack.c.l.b16 %v340
    %v529 = vunpack.c.h.b16 %v340
    %v530 = vunpack.c.l.b16 %v341
    %v531 = vunpack.c.l.b16 %v342
    %v532 = vunpack.c.h.b16 %v342
    %v533 = vunpack.c.l.b16 %v343
    %v534 = vunpack.c.h.b16 %v343
    %v535 = vunpack.c.l.b16 %v344
    %v536 = vunpack.c.h.b16 %v344
    %v537 = vunpack.c.l.b16 %v345
    %v538 = vunpack.c.l.b16 %v346
    %v539 = vunpack.c.h.b16 %v346
    %v540 = vunpack.c.l.b16 %v347
    %v541 = vunpack.c.h.b16 %v347
    %v542 = vunpack.c.l.b16 %v348
    %v543 = vunpack.c.h.b16 %v348
    %v544 = vunpack.c.l.b16 %v349
    %v545 = vunpack.c.l.b16 %v350
    %v546 = vunpack.c.h.b16 %v350
    %v547 = vunpack.c.l.b16 %v351
    %v548 = vunpack.c.h.b16 %v351
    %v549 = vunpack.c.l.b16 %v352
    %v550 = vunpack.c.h.b16 %v352
    %v551 = vunpack.c.l.b16 %v353
    %v552 = vunpack.c.l.b16 %v354
    %v553 = vunpack.c.h.b16 %v354
    %v554 = vunpack.c.l.b16 %v355
    %v555 = vunpack.c.h.b16 %v355
    %v556 = vunpack.c.l.b16 %v356
    %v557 = vunpack.c.h.b16 %v356
    %v558 = vunpack.c.l.b16 %v357
    %v559 = vunpack.c.l.b16 %v358
    %v560 = vunpack.c.h.b16 %v358
    %v561 = vunpack.c.l.b16 %v359
    %v562 = vunpack.c.h.b16 %v359
    %v563 = vunpack.c.l.b16 %v360
    %v564 = vunpack.c.h.b16 %v360
    %v565 = vunpack.c.l.b16 %v361
    %v566 = vunpack.c.l.b16 %v362
    %v567 = vunpack.c.h.b16 %v362
    %v568 = vunpack.c.l.b16 %v363
    %v569 = vunpack.c.h.b16 %v363
    %v570 = vunpack.c.l.b16 %v364
    %v571 = vunpack.c.h.b16 %v364
    %v572 = vunpack.c.l.b16 %v365
    %v573 = vunpack.c.l.b16 %v366
    %v574 = vunpack.c.h.b16 %v366
    %v575 = vunpack.c.l.b16 %v367
    %v576 = vunpack.c.h.b16 %v367
    %v577 = vunpack.c.l.b16 %v368
    %v578 = vunpack.c.h.b16 %v368
    %v579 = vunpack.c.l.b16 %v369
    %v580 = vunpack.c.l.b16 %v370
    %v581 = vunpack.c.h.b16 %v370
    %v582 = vunpack.c.l.b16 %v371
    %v583 = vunpack.c.h.b16 %v371
    %v584 = vunpack.c.l.b16 %v372
    %v585 = vunpack.c.h.b16 %v372
    %v586 = vunpack.c.l.b16 %v373
    %v587 = vpack.c.b16 %v482, %v475
    %v588 = vpack.c.b16 %v483, %v476
    %v589 = vpack.c.b16 %v484, %v477
    %v590 = vpack.c.b16 %v485, %v478
    %v591 = vpack.c.b16 %v486, %v479
    %v592 = vpack.c.b16 %v487, %v480
    %v593 = vpack.c.b16 %v488, %v481
    %v594 = vpack.c.b16 %v496, %v489
    %v595 = vpack.c.b16 %v497, %v490
    %v596 = vpack.c.b16 %v498, %v491
    %v597 = vpack.c.b16 %v499, %v492
    %v598 = vpack.c.b16 %v500, %v493
    %v599 = vpack.c.b16 %v501, %v494
    %v600 = vpack.c.b16 %v502, %v495
    %v601 = vpack.c.b16 %v510, %v503
    %v602 = vpack.c.b16 %v511, %v504
    %v603 = vpack.c.b16 %v512, %v505
    %v604 = vpack.c.b16 %v513, %v506
    %v605 = vpack.c.b16 %v514, %v507
    %v606 = vpack.c.b16 %v515, %v508
    %v607 = vpack.c.b16 %v516, %v509
    %v608 = vpack.c.b16 %v524, %v517
    %v609 = vpack.c.b16 %v525, %v518
    %v610 = vpack.c.b16 %v526, %v519
    %v611 = vpack.c.b16 %v527, %v520
    %v612 = vpack.c.b16 %v528, %v521
    %v613 = vpack.c.b16 %v529, %v522
    %v614 = vpack.c.b16 %v530, %v523
    %v615 = vpack.c.b16 %v538, %v531
    %v616 = vpack.c.b16 %v539, %v532
    %v617 = vpack.c.b16 %v540, %v533
    %v618 = vpack.c.b16 %v541, %v534
    %v619 = vpack.c.b16 %v542, %v535
    %v620 = vpack.c.b16 %v543, %v536
    %v621 = vpack.c.b16 %v544, %v537
    %v622 = vpack.c.b16 %v552, %v545
    %v623 = vpack.c.b16 %v553, %v546
    %v624 = vpack.c.b16 %v554, %v547
    %v625 = vpack.c.b16 %v555, %v548
    %v626 = vpack.c.b16 %v556, %v549
    %v627 = vpack.c.b16 %v557, %v550
    %v628 = vpack.c.b16 %v558, %v551
    %v629 = vpack.c.b16 %v566, %v559
    %v630 = vpack.c.b16 %v567, %v560
    %v631 = vpack.c.b16 %v568, %v561
    %v632 = vpack.c.b16 %v569, %v562
    %v633 = vpack.c.b16 %v570, %v563
    %v634 = vpack.c.b16 %v571, %v564
    %v635 = vpack.c.b16 %v572, %v565
    %v636 = vpack.c.b16 %v580, %v573
    %v637 = vpack.c.b16 %v581, %v574
    %v638 = vpack.c.b16 %v582, %v575
    %v639 = vpack.c.b16 %v583, %v576
    %v640 = vpack.c.b16 %v584, %v577
    %v641 = vpack.c.b16 %v585, %v578
    %v642 = vpack.c.b16 %v586, %v579
    %699 = vmatprep.subr.bf16.mxu0 %v588
    %700 = vmatpush1.bf16.msra.mxu0 %v587
    %701 = vmatprep.subr.bf16.mxu0 %v595
    %702 = vmatpush1.bf16.msra.mxu0 %v594
    %703 = vmatprep.subr.bf16.mxu0 %v602
    %704 = vmatpush1.bf16.msra.mxu0 %v601
    %705 = vmatprep.subr.bf16.mxu0 %v609
    %706 = vmatpush1.bf16.msra.mxu0 %v608
    %707 = vmatprep.subr.bf16.mxu0 %v616
    %708 = vmatpush1.bf16.msra.mxu0 %v615
    %709 = vmatprep.subr.bf16.mxu0 %v623
    %710 = vmatpush1.bf16.msra.mxu0 %v622
    %711 = vmatprep.subr.bf16.mxu0 %v630
    %712 = vmatpush1.bf16.msra.mxu0 %v629
    %713 = vmatprep.subr.bf16.mxu0 %v637
    %714 = vmatpush1.bf16.msra.mxu0 %v636
    %715 = vmatprep.subr.bf16.mxu0 0
    %716 = vmatpush1.bf16.msra.mxu0 0
    %717 = vmatprep.subr.bf16.mxu0 0
    %718 = vmatpush1.bf16.msra.mxu0 0
    %719 = vmatprep.subr.bf16.mxu0 0
    %720 = vmatpush1.bf16.msra.mxu0 0
    %721 = vmatprep.subr.bf16.mxu0 0
    %722 = vmatpush1.bf16.msra.mxu0 0
    %723 = vmatprep.subr.bf16.mxu0 0
    %724 = vmatpush1.bf16.msra.mxu0 0
    %725 = vmatprep.subr.bf16.mxu0 0
    %726 = vmatpush1.bf16.msra.mxu0 0
    %727 = vmatprep.subr.bf16.mxu0 0
    %728 = vmatpush1.bf16.msra.mxu0 0
    %729 = vmatprep.subr.bf16.mxu0 0
    %730 = vmatpush1.bf16.msra.mxu0 0
    %731 = vmatprep.mubr.bf16.mxu0 0
    %732 = vmatmul.mubr.bf16.gmra.mrb[0].mxu0 %v309
    %v733 = vpop.f32.mrb[0].mxu0
    %v734 = vadd.f32 %v379, %v733
    %v735 = vpop.f32.mrb[0].mxu0
    %v736 = vadd.f32 %v383, %v735
    %v737 = vpop.f32.mrb[0].mxu0
    %v738 = vpop.f32.mrb[0].mxu0
    %739 = vdwg.mxu0
    %740 = vmatprep.subr.bf16.mxu0 %v590
    %741 = vmatpush1.bf16.msra.mxu0 %v589
    %742 = vmatprep.subr.bf16.mxu0 %v597
    %743 = vmatpush1.bf16.msra.mxu0 %v596
    %744 = vmatprep.subr.bf16.mxu0 %v604
    %745 = vmatpush1.bf16.msra.mxu0 %v603
    %746 = vmatprep.subr.bf16.mxu0 %v611
    %747 = vmatpush1.bf16.msra.mxu0 %v610
    %748 = vmatprep.subr.bf16.mxu0 %v618
    %749 = vmatpush1.bf16.msra.mxu0 %v617
    %750 = vmatprep.subr.bf16.mxu0 %v625
    %751 = vmatpush1.bf16.msra.mxu0 %v624
    %752 = vmatprep.subr.bf16.mxu0 %v632
    %753 = vmatpush1.bf16.msra.mxu0 %v631
    %754 = vmatprep.subr.bf16.mxu0 %v639
    %755 = vmatpush1.bf16.msra.mxu0 %v638
    %756 = vmatprep.subr.bf16.mxu0 0
    %757 = vmatpush1.bf16.msra.mxu0 0
    %758 = vmatprep.subr.bf16.mxu0 0
    %759 = vmatpush1.bf16.msra.mxu0 0
    %760 = vmatprep.subr.bf16.mxu0 0
    %761 = vmatpush1.bf16.msra.mxu0 0
    %762 = vmatprep.subr.bf16.mxu0 0
    %763 = vmatpush1.bf16.msra.mxu0 0
    %764 = vmatprep.subr.bf16.mxu0 0
    %765 = vmatpush1.bf16.msra.mxu0 0
    %766 = vmatprep.subr.bf16.mxu0 0
    %767 = vmatpush1.bf16.msra.mxu0 0
    %768 = vmatprep.subr.bf16.mxu0 0
    %769 = vmatpush1.bf16.msra.mxu0 0
    %770 = vmatprep.subr.bf16.mxu0 0
    %771 = vmatpush1.bf16.msra.mxu0 0
    %772 = vmatprep.mubr.bf16.mxu0 0
    %773 = vmatmul.mubr.bf16.gmra.mrb[0].mxu0 %v309
    %v774 = vpop.f32.mrb[0].mxu0
    %v775 = vadd.f32 %v387, %v774
    %v776 = vpop.f32.mrb[0].mxu0
    %v777 = vadd.f32 %v391, %v776
    %v778 = vpop.f32.mrb[0].mxu0
    %v779 = vpop.f32.mrb[0].mxu0
    %780 = vdwg.mxu0
    %781 = vmatprep.subr.bf16.mxu0 %v592
    %782 = vmatpush1.bf16.msra.mxu0 %v591
    %783 = vmatprep.subr.bf16.mxu0 %v599
    %784 = vmatpush1.bf16.msra.mxu0 %v598
    %785 = vmatprep.subr.bf16.mxu0 %v606
    %786 = vmatpush1.bf16.msra.mxu0 %v605
    %787 = vmatprep.subr.bf16.mxu0 %v613
    %788 = vmatpush1.bf16.msra.mxu0 %v612
    %789 = vmatprep.subr.bf16.mxu0 %v620
    %790 = vmatpush1.bf16.msra.mxu0 %v619
    %791 = vmatprep.subr.bf16.mxu0 %v627
    %792 = vmatpush1.bf16.msra.mxu0 %v626
    %793 = vmatprep.subr.bf16.mxu0 %v634
    %794 = vmatpush1.bf16.msra.mxu0 %v633
    %795 = vmatprep.subr.bf16.mxu0 %v641
    %796 = vmatpush1.bf16.msra.mxu0 %v640
    %797 = vmatprep.subr.bf16.mxu0 0
    %798 = vmatpush1.bf16.msra.mxu0 0
    %799 = vmatprep.subr.bf16.mxu0 0
    %800 = vmatpush1.bf16.msra.mxu0 0
    %801 = vmatprep.subr.bf16.mxu0 0
    %802 = vmatpush1.bf16.msra.mxu0 0
    %803 = vmatprep.subr.bf16.mxu0 0
    %804 = vmatpush1.bf16.msra.mxu0 0
    %805 = vmatprep.subr.bf16.mxu0 0
    %806 = vmatpush1.bf16.msra.mxu0 0
    %807 = vmatprep.subr.bf16.mxu0 0
    %808 = vmatpush1.bf16.msra.mxu0 0
    %809 = vmatprep.subr.bf16.mxu0 0
    %810 = vmatpush1.bf16.msra.mxu0 0
    %811 = vmatprep.subr.bf16.mxu0 0
    %812 = vmatpush1.bf16.msra.mxu0 0
    %813 = vmatprep.mubr.bf16.mxu0 0
    %814 = vmatmul.mubr.bf16.gmra.mrb[0].mxu0 %v309
    %v815 = vpop.f32.mrb[0].mxu0
    %v816 = vadd.f32 %v395, %v815
    %v817 = vpop.f32.mrb[0].mxu0
    %v818 = vadd.f32 %v399, %v817
    %v819 = vpop.f32.mrb[0].mxu0
    %v820 = vpop.f32.mrb[0].mxu0
    %821 = vdwg.mxu0
    %822 = vmatprep.subr.bf16.mxu0 0
    %823 = vmatpush1.bf16.msra.mxu0 %v593
    %824 = vmatprep.subr.bf16.mxu0 0
    %825 = vmatpush1.bf16.msra.mxu0 %v600
    %826 = vmatprep.subr.bf16.mxu0 0
    %827 = vmatpush1.bf16.msra.mxu0 %v607
    %828 = vmatprep.subr.bf16.mxu0 0
    %829 = vmatpush1.bf16.msra.mxu0 %v614
    %830 = vmatprep.subr.bf16.mxu0 0
    %831 = vmatpush1.bf16.msra.mxu0 %v621
    %832 = vmatprep.subr.bf16.mxu0 0
    %833 = vmatpush1.bf16.msra.mxu0 %v628
    %834 = vmatprep.subr.bf16.mxu0 0
    %835 = vmatpush1.bf16.msra.mxu0 %v635
    %836 = vmatprep.subr.bf16.mxu0 0
    %837 = vmatpush1.bf16.msra.mxu0 %v642
    %838 = vmatprep.subr.bf16.mxu0 0
    %839 = vmatpush1.bf16.msra.mxu0 0
    %840 = vmatprep.subr.bf16.mxu0 0
    %841 = vmatpush1.bf16.msra.mxu0 0
    %842 = vmatprep.subr.bf16.mxu0 0
    %843 = vmatpush1.bf16.msra.mxu0 0
    %844 = vmatprep.subr.bf16.mxu0 0
    %845 = vmatpush1.bf16.msra.mxu0 0
    %846 = vmatprep.subr.bf16.mxu0 0
    %847 = vmatpush1.bf16.msra.mxu0 0
    %848 = vmatprep.subr.bf16.mxu0 0
    %849 = vmatpush1.bf16.msra.mxu0 0
    %850 = vmatprep.subr.bf16.mxu0 0
    %851 = vmatpush1.bf16.msra.mxu0 0
    %852 = vmatprep.subr.bf16.mxu0 0
    %853 = vmatpush1.bf16.msra.mxu0 0
    %854 = vmatprep.mubr.bf16.mxu0 0
    %855 = vmatmul.mubr.bf16.gmra.mrb[0].mxu0 %v309
    %v856 = vpop.f32.mrb[0].mxu0
    %v857 = vadd.f32 %v403, %v856
    %v858 = vpop.f32.mrb[0].mxu0
    %v859 = vpop.f32.mrb[0].mxu0
    %v860 = vpop.f32.mrb[0].mxu0
    %861 = vdwg.mxu0
    %v862 = vtanh.pop %v734
    %v863 = vtanh.pop %v736
    %v864 = vtanh.pop %v775
    %v865 = vtanh.pop %v777
    %v866 = vtanh.pop %v816
    %v867 = vtanh.pop %v818
    %v868 = vtanh.pop %v857
    %v869 = vpack.c.bf16 %v862, %v862
    %v870 = vpack.c.bf16 %v863, %v863
    %v871 = vpack.c.bf16 %v864, %v864
    %v872 = vpack.c.bf16 %v865, %v865
    %v873 = vpack.c.bf16 %v866, %v866
    %v874 = vpack.c.bf16 %v867, %v867
    %v875 = vpack.c.bf16 %v868, %v868
    %v883 = vunpack.c.l.b16 %v869
    %v884 = vunpack.c.l.b16 %v870
    %v885 = vunpack.c.l.b16 %v871
    %v886 = vunpack.c.l.b16 %v872
    %v887 = vunpack.c.l.b16 %v873
    %v888 = vunpack.c.l.b16 %v874
    %v889 = vunpack.c.l.b16 %v875
    %v890 = vpack.c.b16 %v884, %v883
    %v891 = vpack.c.b16 %v886, %v885
    %v892 = vpack.c.b16 %v888, %v887
    %v893 = vpack.c.b16 %v889, %v889
    %898 = vst [vmem:[#allocation10] sm:$0xff] %v890
    %899 = vst [vmem:[#allocation10 + $0x8] sm:$0xff] %v891
    %900 = vst [vmem:[#allocation10 + $0x10] sm:$0xff] %v892
    %901 = vst [vmem:[#allocation10 + $0x18] sm:$0xf] %v893
    // Predicated region
    $region46: #{tpu_custom_call.1} parent=1 // pred_check
      _
    $region47: #{tpu_custom_call.1} parent=1 // pred_check_branch
      %903 = sbr.rel (0) target = $region49
    $region48: #{tpu_custom_call.1} parent=1 // pred_region
      %s905 = ssub.s32 448, 448
      %906 = vsyncadd [#allocation4], %s905
      %s908 = sshll.u32 [#allocation10], 4
      %s909 = int_to_ptr.vmem [resolvable:$true] %s908
      %911 = dma.vmem_to_hbm [thread:$0]  %s909, 448, %s7, [#allocation4]
    $region49: #{tpu_custom_call.1} parent=1 // pred_fallthru
      _
    // Predicated region
    $region50: #{tpu_custom_call.1} parent=1 // pred_check
      _
    $region51: #{tpu_custom_call.1} parent=1 // pred_check_branch
      %913 = sbr.rel (0) target = $region53
    $region52: #{tpu_custom_call.1} parent=1 // pred_region
      %914 = dma.done [#allocation4], 448
    $region53: #{tpu_custom_call.1} parent=1 // pred_fallthru
      _
    %915 = vsyncpa [#allocation3], 1
    %916 = vsyncpa [#allocation6], 1
    %917 = vsyncpa [#allocation9], 1
    %918 = vsyncpa [#allocation4], 1

</llo_original>
